<compile_context>
chip_gen: v6e
topology: v6e:2x2x1
jax: 0.10.0
libtpu: 0.0.40
codegen_flags: <defaults>
</compile_context>

<pallas_src>
import jax
import jax.numpy as jnp
from jax.experimental import pallas as pl
from jax.experimental.pallas import tpu as pltpu

_LANE = 128
_SUBLANE = 8
_TARGET_BLOCK_ELEMS = 1 << 20      # ~4 MiB of f32 per block
_MIN_GRID_STEPS = 16               # keep both v7x TensorCores fed
_VMEM_LIMIT_BYTES = 32 << 20       # >= v5e scoped default; safe on v7x (64 MiB phys)


def _normalize_kernel(params_ref, x_ref, o_ref):
    # params_ref: (tile_nc, 2) = [mean, 1/std] per row, broadcast across lanes.
    # x_ref / o_ref: (tile_nc, tile_hw).  Pure elementwise VPU work.
    mean = params_ref[:, 0:1]
    inv_std = params_ref[:, 1:2]
    o_ref[...] = (x_ref[...] - mean) * inv_std


def _choose_tiles(NC, HW):
    """Pick (tile_nc, tile_hw) honoring the (8,128) rule and VMEM budget."""
    # Sublane tile: multiple of 8, or full extent when NC < 8.
    tile_nc = NC if NC < _SUBLANE else _SUBLANE

    # Lane tile: prefer full contiguous rows when they fit the budget,
    # otherwise the largest multiple of 128 that does.  (Full-extent HW is
    # always a legal block dim, even when not a multiple of 128.)
    row_budget = max(_LANE, _TARGET_BLOCK_ELEMS // max(tile_nc, 1))
    if HW <= row_budget or HW < _LANE:
        tile_hw = HW
    else:
        tile_hw = min((row_budget // _LANE) * _LANE, (HW // _LANE) * _LANE)

    # Grow the sublane tile (multiples of 8) toward the target block size,
    # but keep enough grid steps for megacore double-buffering.  Small
    # problems stop growing early, which is fine (they are fast anyway).
    if NC >= _SUBLANE:
        def n_steps(tn):
            return pl.cdiv(NC, tn) * pl.cdiv(HW, tile_hw)
        while (tile_nc * tile_hw < _TARGET_BLOCK_ELEMS
               and tile_nc + _SUBLANE <= NC
               and n_steps(tile_nc + _SUBLANE) >= _MIN_GRID_STEPS):
            tile_nc += _SUBLANE

    return tile_nc, tile_hw


def normalize(x, means, stds):
    """Pallas equivalent of `(x - means[None,:,None,None]) / stds[None,:,None,None]`.

    x: (N, 3, H, W) float32; means/stds: (3,) float32.
    """
    N, C, H, W = x.shape
    assert C == 3
    NC = N * C
    HW = H * W

    # Per-channel params packed as one (NC, 2) array: [mean, 1/std] per row
    # of the flattened (NC, HW) view (row index = n*C + c).
    inv_std = 1.0 / stds                                  # (3,)
    params = jnp.stack([means, inv_std], axis=-1)         # (3, 2)
    params = jnp.tile(params, (N, 1)).astype(x.dtype)     # (NC, 2)

    # Lane-dense view; row-major reshape is free.
    x2 = x.reshape(NC, HW)

    tile_nc, tile_hw = _choose_tiles(NC, HW)
    grid = (pl.cdiv(NC, tile_nc), pl.cdiv(HW, tile_hw))

    out2 = pl.pallas_call(
        _normalize_kernel,
        out_shape=jax.ShapeDtypeStruct((NC, HW), x.dtype),
        grid=grid,
        in_specs=[
            pl.BlockSpec((tile_nc, 2), lambda i, j: (i, 0)),        # params
            pl.BlockSpec((tile_nc, tile_hw), lambda i, j: (i, j)),  # x
        ],
        out_specs=pl.BlockSpec((tile_nc, tile_hw), lambda i, j: (i, j)),
        compiler_params=pltpu.CompilerParams(
            dimension_semantics=("parallel", "parallel"),
            vmem_limit_bytes=_VMEM_LIMIT_BYTES,
        ),
    )(params, x2)

    return out2.reshape(N, C, H, W)


def normalize_ref(x, means, stds):
    return (x - means.reshape(1, 3, 1, 1)) / stds.reshape(1, 3, 1, 1)


if __name__ == "__main__":
    # Deterministic buffers from the module's __init__ (ImageNet stats).
    means = jnp.array([0.485, 0.456, 0.406], dtype=jnp.float32)
    stds = jnp.array([0.229, 0.224, 0.225], dtype=jnp.float32)

    key = jax.random.PRNGKey(0)

    # Primary small case: N=2, C=3 (module asserts 3 channels), 16x16.
    x = jax.random.uniform(key, (2, 3, 16, 16), dtype=jnp.float32)
    out = normalize(x, means, stds)
    jax.block_until_ready(out)
    ref = normalize_ref(x, means, stds)
    assert out.shape == x.shape and out.dtype == x.dtype
    assert jnp.allclose(out, ref, atol=1e-5, rtol=1e-5)

    # Ragged case: NC=9 (not a multiple of 8) and HW=225 (not a multiple of
    # 128) exercises Pallas OOB read-padding / masked writes (no pad/slice).
    x2 = jax.random.uniform(jax.random.PRNGKey(0), (3, 3, 15, 15),
                            dtype=jnp.float32)
    out2 = normalize(x2, means, stds)
    jax.block_until_ready(out2)
    ref2 = normalize_ref(x2, means, stds)
    assert out2.shape == x2.shape and out2.dtype == x2.dtype
    assert jnp.allclose(out2, ref2, atol=1e-5, rtol=1e-5)

    print("KERNEL_OK")
</pallas_src>

<mosaic_0001>
module attributes {stable_mosaic.version = 11 : i64} {
  func.func @_normalize_kernel(%arg0: i32, %arg1: i32, %arg2: memref<6x2xf32, #tpu.memory_space<vmem>>, %arg3: memref<6x256xf32, #tpu.memory_space<vmem>>, %arg4: memref<6x256xf32, #tpu.memory_space<vmem>>) attributes {dimension_semantics = [#tpu.dimension_semantics<parallel>, #tpu.dimension_semantics<parallel>], iteration_bounds = array<i64: 1, 1>, scalar_prefetch = 0 : i64, scratch_operands = 0 : i64, tpu.core_type = #tpu.core_type<tc>, window_params = [{transform_indices = @transform_0, window_bounds = array<i64: 6, 2>}, {transform_indices = @transform_1, window_bounds = array<i64: 6, 256>}, {transform_indices = @transform_2, window_bounds = array<i64: 6, 256>}]} {
    %c0 = arith.constant 0 : index
    %c0_0 = arith.constant 0 : index
    %0 = vector.load %arg2[%c0, %c0_0] : memref<6x2xf32, #tpu.memory_space<vmem>>, vector<6x1xf32>
    %c0_1 = arith.constant 0 : index
    %c1 = arith.constant 1 : index
    %1 = vector.load %arg2[%c0_1, %c1] : memref<6x2xf32, #tpu.memory_space<vmem>>, vector<6x1xf32>
    %c0_2 = arith.constant 0 : index
    %c0_3 = arith.constant 0 : index
    %2 = vector.load %arg3[%c0_2, %c0_3] : memref<6x256xf32, #tpu.memory_space<vmem>>, vector<6x256xf32>
    %3 = vector.broadcast %0 : vector<6x1xf32> to vector<6x256xf32>
    %4 = arith.subf %2, %3 : vector<6x256xf32>
    %5 = vector.broadcast %1 : vector<6x1xf32> to vector<6x256xf32>
    %6 = arith.mulf %4, %5 : vector<6x256xf32>
    %c0_4 = arith.constant 0 : index
    %c0_5 = arith.constant 0 : index
    %7 = vector.load %arg4[%c0_4, %c0_5] : memref<6x256xf32, #tpu.memory_space<vmem>>, vector<6x256xf32>
    tpu.vector_store %arg4[%c0_4, %c0_5], %6 {strides = array<i32>} : memref<6x256xf32, #tpu.memory_space<vmem>>, vector<6x256xf32>,
    return
  }
  func.func @transform_0(%arg0: i32, %arg1: i32) -> (i32, i32) {
    %c0_i32 = arith.constant 0 : i32
    %c0_i32_0 = arith.constant 0 : i32
    return %arg0, %c0_i32 : i32, i32
  }
  func.func @transform_1(%arg0: i32, %arg1: i32) -> (i32, i32) {
    %c0_i32 = arith.constant 0 : i32
    return %arg0, %arg1 : i32, i32
  }
  func.func @transform_2(%arg0: i32, %arg1: i32) -> (i32, i32) {
    %c0_i32 = arith.constant 0 : i32
    return %arg0, %arg1 : i32, i32
  }
}

</mosaic_0001>

<llo_original>
// kernel: tpu_custom_call.1
$region0: #{tpu_custom_call.1}
  #allocation0 [shape = 'u32[]', space=smem, size = 0x4, offset = 0x4, fixed_abs, tag = 'smem constant byte address 0x4 - core index']
  #allocation1 [shape = 'u32[144,128]{1,0:T(1,128)}', space=vmem, size = 0x12000, scoped, tag = 'internal scratch']
  %s0 = inlined_call_operand.vmem [shape: f32[6,2], index: 0, kind: input, shape index: {}]
  %s1 = inlined_call_operand.hbm [shape: f32[6,256], index: 1, kind: input, shape index: {}]
  %s2 = inlined_call_operand.hbm [shape: f32[6,256], index: 2, kind: output, shape index: {}]
  %s3 = sld [smem:[#allocation0]]
  $region22: #{tpu_custom_call.1} parent=0
    _
  %s5 = ssub.s32 1, %s3
  %s6 = scalar_select 0, %s5, %s3
  $region1: #{tpu_custom_call.1} parent=0
    #allocation2 [shape = 'u8[8192]{0}', space=vmem, size = 0x2000, scoped, tag = 'input window, operand 1, single buffered']
    #allocation3 [shape = 's32[1]{0}', space=sflag, size = 0x4, scoped, tag = 'scoped memory for tpu_custom_call.1']
    #allocation4 [shape = 's32[1]{0}', space=sflag, size = 0x4, scoped, tag = 'scoped memory for tpu_custom_call.1']
    #allocation5 [shape = 'u8[8192]{0}', space=vmem, size = 0x2000, scoped, tag = 'output window, operand 0, single buffered']
    %7 = vsyncpa [#allocation3], 0
    %8 = vsyncpa [#allocation4], 0
    // Predicated region
    $region2: #{tpu_custom_call.1} parent=1 // pred_check
      _
    $region3: #{tpu_custom_call.1} parent=1 // pred_check_branch
      %10 = sbr.rel (0) target = $region5
    $region4: #{tpu_custom_call.1} parent=1 // pred_region
      _
    $region5: #{tpu_custom_call.1} parent=1 // pred_fallthru
      _
    // Predicated region
    $region6: #{tpu_custom_call.1} parent=1 // pred_check
      _
    $region7: #{tpu_custom_call.1} parent=1 // pred_check_branch
      %12 = sbr.rel (0) target = $region9
    $region8: #{tpu_custom_call.1} parent=1 // pred_region
      %s14 = ssub.s32 256, 256
      %15 = vsyncadd [#allocation3], %s14
      %s17 = sshll.u32 [#allocation2], 4
      %s18 = int_to_ptr.vmem [resolvable:$true] %s17
      %20 = dma.hbm_to_vmem [thread:$0]  %s1, 256, %s18, [#allocation3]
    $region9: #{tpu_custom_call.1} parent=1 // pred_fallthru
      _
    // Predicated region
    $region10: #{tpu_custom_call.1} parent=1 // pred_check
      _
    $region11: #{tpu_custom_call.1} parent=1 // pred_check_branch
      %22 = sbr.rel (0) target = $region13
    $region12: #{tpu_custom_call.1} parent=1 // pred_region
      %23 = dma.done [#allocation3], 256
    $region13: #{tpu_custom_call.1} parent=1 // pred_fallthru
      _
    %v24 = vld [vmem:[%s0] sm:$0x3f]
    %v25 = vld [vmem:[#allocation2] sm:$0x3f]
    %v26 = vld [vmem:[#allocation2 + $0x8] sm:$0x3f]
    %28 = vset.pattern.permute.xlu0 0
    %29 = vperm.xlu0 %28, %v24
    %v30 = vpop.permute.xlu0 %29
    %v32 = vsub.f32 %v25, %v30
    %v33 = vsub.f32 %v26, %v30
    %34 = vset.pattern.permute.xlu0 1
    %35 = vperm.xlu0 %34, %v24
    %v36 = vpop.permute.xlu0 %35
    %v38 = vmul.f32 %v32, %v36
    %v39 = vmul.f32 %v33, %v36
    %40 = vst [vmem:[#allocation5] sm:$0x3f] %v38
    %41 = vst [vmem:[#allocation5 + $0x8] sm:$0x3f] %v39
    // Predicated region
    $region14: #{tpu_custom_call.1} parent=1 // pred_check
      _
    $region15: #{tpu_custom_call.1} parent=1 // pred_check_branch
      %43 = sbr.rel (0) target = $region17
    $region16: #{tpu_custom_call.1} parent=1 // pred_region
      %s45 = ssub.s32 256, 256
      %46 = vsyncadd [#allocation4], %s45
      %s48 = sshll.u32 [#allocation5], 4
      %s49 = int_to_ptr.vmem [resolvable:$true] %s48
      %51 = dma.vmem_to_hbm [thread:$0]  %s49, 256, %s2, [#allocation4]
    $region17: #{tpu_custom_call.1} parent=1 // pred_fallthru
      _
    // Predicated region
    $region18: #{tpu_custom_call.1} parent=1 // pred_check
      _
    $region19: #{tpu_custom_call.1} parent=1 // pred_check_branch
      %53 = sbr.rel (0) target = $region21
    $region20: #{tpu_custom_call.1} parent=1 // pred_region
      %54 = dma.done [#allocation4], 256
    $region21: #{tpu_custom_call.1} parent=1 // pred_fallthru
      _
    %55 = vsyncpa [#allocation3], 1
    %56 = vsyncpa [#allocation4], 1

</llo_original>
